<compile_context>
chip_gen: v7x
topology: tpu7x:2x2x1
jax: 0.10.0
libtpu: 0.0.40
codegen_flags: <defaults>
</compile_context>

<pallas_src>
import math

import jax
import jax.numpy as jnp
from jax.experimental import pallas as pl
from jax.experimental.pallas import tpu as pltpu


def build_positional_encoding(d_model: int, max_len: int = 5000) -> jnp.ndarray:
    """Replicates the PyTorch buffer: shape (max_len, 1, d_model), float32."""
    position = jnp.arange(max_len, dtype=jnp.float32)[:, None]                 # (L, 1)
    div_term = jnp.exp(
        jnp.arange(0, d_model, 2, dtype=jnp.float32)
        * (-math.log(10000.0) / d_model)
    )                                                                           # (ceil(D/2),)
    ang = position * div_term                                                   # (L, ceil(D/2))
    pe = jnp.zeros((max_len, d_model), dtype=jnp.float32)
    pe = pe.at[:, 0::2].set(jnp.sin(ang))
    pe = pe.at[:, 1::2].set(jnp.cos(ang)[:, : d_model // 2])   # guard odd d_model
    # unsqueeze(0).transpose(0, 1) -> (max_len, 1, d_model)
    return pe[:, None, :]


def _pe_add_kernel(x_ref, pe_ref, o_ref):
    # x_ref: (TS, B, D) in x.dtype; pe_ref: (TS, D) float32 (sublane-dense).
    # Add in f32 (pe stays f32), cast only at the store.
    pe = pe_ref[...][:, None, :]                 # (TS, 1, D) broadcast over batch
    o_ref[...] = (x_ref[...] + pe).astype(o_ref.dtype)


def _vmem_capacity_bytes() -> int:
    """Physical VMEM of the current generation; conservative fallback = v7x."""
    try:
        info = pltpu.get_tpu_info()
        cap = getattr(info, "vmem_capacity_bytes", None)
        if cap:
            return int(cap)
    except Exception:
        pass
    return 64 << 20


def positional_encoding(
    x: jnp.ndarray,
    pe: jnp.ndarray,
    *,
    target_block_bytes: int | None = None,   # None -> derive from VMEM capacity
    min_pallas_bytes: int = 1 << 20,         # below this, XLA's fused add wins
    force_pallas: bool = False,
    donate_x: bool = False,
) -> jnp.ndarray:
    """x: (S, B, D); pe: (max_len, 1, D) float32. Returns x + pe[:S] in x.dtype."""
    S, B, D = x.shape
    pe_2d = pe[:S, 0, :]                      # (S, D) float32 — squeezed, NOT downcast

    itemsize = x.dtype.itemsize
    total_bytes = x.size * itemsize
    if total_bytes < min_pallas_bytes and not force_pallas:
        # Tiny problem: kernel launch + per-step overhead is pure loss.
        return x + pe_2d[:, None, :].astype(x.dtype)

    vmem_cap = _vmem_capacity_bytes()
    if target_block_bytes is None:
        # ~4 MiB on v7x (64 MiB VMEM), ~8 MiB on v5e/v6e (128 MiB VMEM).
        target_block_bytes = int(min(max(vmem_cap // 16, 4 << 20), 8 << 20))

    # --- Tile the sequence axis. -------------------------------------------
    row_bytes = B * D * itemsize
    ts_cap = max(1, target_block_bytes // row_bytes)
    TS = min(S, ts_cap)
    # Keep >= 4 grid steps so pipelining stays active and v7x's second
    # TensorCore gets work on the "parallel" axis.
    min_steps = 4
    if pl.cdiv(S, TS) < min_steps:
        TS = max(pl.cdiv(S, min_steps), min(8, S))
    # Sublane-dense pe blocks: TS multiple of 8 unless it covers all of S.
    if TS < S:
        TS = min(S, max(8, (TS // 8) * 8))
    grid = (pl.cdiv(S, TS),)                  # partial last block is masked by Pallas

    # --- VMEM budget: 2-deep double buffering of (x, out, pe) blocks. -------
    x_block_bytes = TS * B * D * itemsize
    pe_block_bytes = TS * D * 4               # f32, sublane-dense
    vmem_needed = 2 * (2 * x_block_bytes + pe_block_bytes)
    vmem_limit = int(min(max(2 * vmem_needed, 8 << 20), (vmem_cap * 3) // 4))

    extra_kwargs = {}
    if donate_x:
        # Callers that donate x avoid a second S*B*D HBM allocation.
        extra_kwargs["input_output_aliases"] = {0: 0}

    return pl.pallas_call(
        _pe_add_kernel,
        out_shape=jax.ShapeDtypeStruct((S, B, D), x.dtype),
        grid_spec=pltpu.PrefetchScalarGridSpec(
            num_scalar_prefetch=0,
            grid=grid,
            in_specs=[
                # Last two block dims equal the full array extents (B, D):
                # the (8, 128) rule is satisfied for any B, D.
                pl.BlockSpec((TS, B, D), lambda i: (i, 0, 0)),
                # pe squeezed to 2-D: (TS, D) is sublane/lane dense (TS % 8 == 0).
                pl.BlockSpec((TS, D), lambda i: (i, 0)),
            ],
            out_specs=pl.BlockSpec((TS, B, D), lambda i: (i, 0, 0)),
        ),
        compiler_params=pltpu.CompilerParams(
            dimension_semantics=("parallel",),   # sequence steps are independent
            vmem_limit_bytes=vmem_limit,
        ),
        **extra_kwargs,
    )(x, pe_2d)


if __name__ == "__main__":
    key = jax.random.PRNGKey(0)
    k_small, k_med = jax.random.split(key)

    # --- 1) Small, module-consistent shape (seq=8, batch=2, d_model=32). ----
    # Forced through the Pallas path so the kernel itself is exercised.
    d_model, max_len, seq, batch = 32, 64, 8, 2
    pe_small = build_positional_encoding(d_model, max_len)
    x_small = jax.random.normal(k_small, (seq, batch, d_model), dtype=jnp.float32)

    out_small = jax.block_until_ready(
        positional_encoding(x_small, pe_small, force_pallas=True))
    ref_small = x_small + pe_small[:seq]
    assert out_small.shape == (seq, batch, d_model)
    assert jnp.allclose(out_small, ref_small, atol=1e-6, rtol=1e-6)

    # Un-forced call on the tiny shape takes the plain-JAX fallback; same result.
    out_small_fb = jax.block_until_ready(positional_encoding(x_small, pe_small))
    assert jnp.allclose(out_small_fb, ref_small, atol=1e-6, rtol=1e-6)

    # --- 2) Moderate lane/sublane-dense shape: exercises the tiled path with
    #        a cdiv grid and a partial last block (S=250 does not divide TS).
    d2, max_len2, S2, B2 = 128, 512, 250, 8
    pe_med = build_positional_encoding(d2, max_len2)
    x_med = jax.random.normal(k_med, (S2, B2, d2), dtype=jnp.float32)

    out_med = jax.block_until_ready(
        positional_encoding(x_med, pe_med, force_pallas=True))
    ref_med = x_med + pe_med[:S2]
    assert out_med.shape == (S2, B2, d2)
    assert jnp.allclose(out_med, ref_med, atol=1e-6, rtol=1e-6)

    # --- 3) bf16 input: pe kept in f32, add done in f32 in-kernel, cast at store.
    x_bf16 = x_med.astype(jnp.bfloat16)
    out_bf16 = jax.block_until_ready(
        positional_encoding(x_bf16, pe_med, force_pallas=True))
    ref_bf16 = (x_bf16.astype(jnp.float32) + pe_med[:S2]).astype(jnp.bfloat16)
    assert out_bf16.dtype == jnp.bfloat16
    assert jnp.allclose(out_bf16.astype(jnp.float32),
                        ref_bf16.astype(jnp.float32), atol=1e-2, rtol=1e-2)

    print("KERNEL_OK")
</pallas_src>

<mosaic_0001>
module attributes {stable_mosaic.version = 11 : i64} {
  func.func @_pe_add_kernel(%arg0: i32, %arg1: memref<8x2x32xf32, #tpu.memory_space<vmem>>, %arg2: memref<8x32xf32, #tpu.memory_space<vmem>>, %arg3: memref<8x2x32xf32, #tpu.memory_space<vmem>>) attributes {dimension_semantics = [#tpu.dimension_semantics<parallel>], iteration_bounds = array<i64: 1>, scalar_prefetch = 0 : i64, scratch_operands = 0 : i64, tpu.core_type = #tpu.core_type<tc>, window_params = [{transform_indices = @transform_0, window_bounds = array<i64: 8, 2, 32>}, {transform_indices = @transform_1, window_bounds = array<i64: 8, 32>}, {transform_indices = @transform_2, window_bounds = array<i64: 8, 2, 32>}]} {
    %c0 = arith.constant 0 : index
    %c0_0 = arith.constant 0 : index
    %0 = vector.load %arg2[%c0, %c0_0] : memref<8x32xf32, #tpu.memory_space<vmem>>, vector<8x32xf32>
    %1 = vector.shape_cast %0 : vector<8x32xf32> to vector<8x1x32xf32>
    %c0_1 = arith.constant 0 : index
    %c0_2 = arith.constant 0 : index
    %c0_3 = arith.constant 0 : index
    %2 = vector.load %arg1[%c0_1, %c0_2, %c0_3] : memref<8x2x32xf32, #tpu.memory_space<vmem>>, vector<8x2x32xf32>
    %3 = vector.broadcast %1 : vector<8x1x32xf32> to vector<8x2x32xf32>
    %4 = arith.addf %2, %3 : vector<8x2x32xf32>
    %c0_4 = arith.constant 0 : index
    %c0_5 = arith.constant 0 : index
    %c0_6 = arith.constant 0 : index
    %5 = vector.load %arg3[%c0_4, %c0_5, %c0_6] : memref<8x2x32xf32, #tpu.memory_space<vmem>>, vector<8x2x32xf32>
    tpu.vector_store %arg3[%c0_4, %c0_5, %c0_6], %4 {strides = array<i32>} : memref<8x2x32xf32, #tpu.memory_space<vmem>>, vector<8x2x32xf32>,
    return
  }
  func.func @transform_0(%arg0: i32) -> (i32, i32, i32) {
    %c0_i32 = arith.constant 0 : i32
    %c0_i32_0 = arith.constant 0 : i32
    %c0_i32_1 = arith.constant 0 : i32
    return %arg0, %c0_i32, %c0_i32_0 : i32, i32, i32
  }
  func.func @transform_1(%arg0: i32) -> (i32, i32) {
    %c0_i32 = arith.constant 0 : i32
    %c0_i32_0 = arith.constant 0 : i32
    return %arg0, %c0_i32 : i32, i32
  }
  func.func @transform_2(%arg0: i32) -> (i32, i32, i32) {
    %c0_i32 = arith.constant 0 : i32
    %c0_i32_0 = arith.constant 0 : i32
    %c0_i32_1 = arith.constant 0 : i32
    return %arg0, %c0_i32, %c0_i32_0 : i32, i32, i32
  }
}

</mosaic_0001>

<llo_original>
// kernel: tpu_custom_call.1
$region0: #{tpu_custom_call.1}
  #allocation0 [shape = 'u32[]', space=smem, size = 0x4, offset = 0x4, fixed_abs, tag = 'smem constant byte address 0x4 - core index']
  #allocation1 [shape = 'u32[144,128]{1,0:T(1,128)}', space=vmem, size = 0x12000, scoped, tag = 'internal scratch']
  %s0 = inlined_call_operand.hbm [shape: f32[8,2,32], index: 0, kind: input, shape index: {}]
  %s1 = inlined_call_operand.hbm [shape: f32[8,32], index: 1, kind: input, shape index: {}]
  %s2 = inlined_call_operand.hbm [shape: f32[8,2,32], index: 2, kind: output, shape index: {}]
  %s3 = sld [smem:[#allocation0]]
  $region26: #{tpu_custom_call.1} parent=0
    _
  %s5 = ssub.s32 1, %s3
  %s6 = scalar_select 0, %s5, %s3
  $region1: #{tpu_custom_call.1} parent=0
    #allocation2 [shape = 'u8[8192]{0}', space=vmem, size = 0x2000, scoped, tag = 'input window, operand 0, single buffered']
    #allocation3 [shape = 's32[1]{0}', space=sflag, size = 0x4, scoped, tag = 'scoped memory for tpu_custom_call.1']
    #allocation4 [shape = 's32[1]{0}', space=sflag, size = 0x4, scoped, tag = 'scoped memory for tpu_custom_call.1']
    #allocation5 [shape = 'u8[4096]{0}', space=vmem, size = 0x1000, scoped, tag = 'input window, operand 1, single buffered']
    #allocation6 [shape = 's32[1]{0}', space=sflag, size = 0x4, scoped, tag = 'scoped memory for tpu_custom_call.1']
    #allocation7 [shape = 'u8[8192]{0}', space=vmem, size = 0x2000, scoped, tag = 'output window, operand 0, single buffered']
    %7 = vsyncpa [#allocation3], 0
    %8 = vsyncpa [#allocation6], 0
    %9 = vsyncpa [#allocation4], 0
    // Predicated region
    $region2: #{tpu_custom_call.1} parent=1 // pred_check
      _
    $region3: #{tpu_custom_call.1} parent=1 // pred_check_branch
      %11 = sbr.rel (0) target = $region5
    $region4: #{tpu_custom_call.1} parent=1 // pred_region
      %s13 = ssub.s32 256, 256
      %14 = vsyncadd [#allocation3], %s13
      %s15 = sshll.u32 [#allocation2], 4
      %s16 = int_to_ptr.vmem [resolvable:$true] %s15
      %21 = dma.hbm_to_vmem [thread:$0]  %s0, 256, %s16, [#allocation3], 32, 32, 2
    $region5: #{tpu_custom_call.1} parent=1 // pred_fallthru
      _
    // Predicated region
    $region6: #{tpu_custom_call.1} parent=1 // pred_check
      _
    $region7: #{tpu_custom_call.1} parent=1 // pred_check_branch
      %23 = sbr.rel (0) target = $region9
    $region8: #{tpu_custom_call.1} parent=1 // pred_region
      %s25 = ssub.s32 128, 128
      %26 = vsyncadd [#allocation6], %s25
      %s28 = sshll.u32 [#allocation5], 4
      %s29 = int_to_ptr.vmem [resolvable:$true] %s28
      %31 = dma.hbm_to_vmem [thread:$0]  %s1, 128, %s29, [#allocation6]
    $region9: #{tpu_custom_call.1} parent=1 // pred_fallthru
      _
    // Predicated region
    $region10: #{tpu_custom_call.1} parent=1 // pred_check
      _
    $region11: #{tpu_custom_call.1} parent=1 // pred_check_branch
      %33 = sbr.rel (0) target = $region13
    $region12: #{tpu_custom_call.1} parent=1 // pred_region
      %34 = dma.done [#allocation3], 256
    $region13: #{tpu_custom_call.1} parent=1 // pred_fallthru
      _
    // Predicated region
    $region14: #{tpu_custom_call.1} parent=1 // pred_check
      _
    $region15: #{tpu_custom_call.1} parent=1 // pred_check_branch
      %36 = sbr.rel (0) target = $region17
    $region16: #{tpu_custom_call.1} parent=1 // pred_region
      %37 = dma.done [#allocation6], 128
    $region17: #{tpu_custom_call.1} parent=1 // pred_fallthru
      _
    %v38 = vld [vmem:[#allocation5] sm:$0xff]
    %v40 = vcombine.high %v38, %v38
    %v42 = vunpack.c.l.s4 1966171168
    %v43 = vunpack.c.0.s8 %v42
    %v44 = vlaneseq
    %v45 = vshrl.u32 %v44, 7
    %v46 = vsub.s32 %v43, %v45
    %v47 = vrot.slane %v38, %v46
    %v49 = vunpack.c.l.s4 1966171168
    %v50 = vunpack.c.0.s8 %v49
    %v51 = vlaneseq
    %v52 = vshrl.u32 %v51, 7
    %v53 = vsub.s32 %v50, %v52
    %v54 = vrot.slane %v40, %v53
    %v55 = vcombine.high %v47, %v47
    %v56 = vcombine.high %v54, %v54
    %v58 = vunpack.c.l.s4 1966171168
    %v59 = vunpack.c.0.s8 %v58
    %v60 = vlaneseq
    %v61 = vshrl.u32 %v60, 7
    %v62 = vsub.s32 %v59, %v61
    %v63 = vrot.slane %v47, %v62
    %v65 = vunpack.c.l.s4 1966171168
    %v66 = vunpack.c.0.s8 %v65
    %v67 = vlaneseq
    %v68 = vshrl.u32 %v67, 7
    %v69 = vsub.s32 %v66, %v68
    %v70 = vrot.slane %v54, %v69
    %v72 = vunpack.c.l.s4 1966171168
    %v73 = vunpack.c.0.s8 %v72
    %v74 = vlaneseq
    %v75 = vshrl.u32 %v74, 7
    %v76 = vsub.s32 %v73, %v75
    %v77 = vrot.slane %v55, %v76
    %v79 = vunpack.c.l.s4 1966171168
    %v80 = vunpack.c.0.s8 %v79
    %v81 = vlaneseq
    %v82 = vshrl.u32 %v81, 7
    %v83 = vsub.s32 %v80, %v82
    %v84 = vrot.slane %v56, %v83
    %v85 = vcombine.high %v63, %v63
    %v86 = vcombine.high %v70, %v70
    %v87 = vcombine.high %v77, %v77
    %v88 = vcombine.high %v84, %v84
    %v89 = vld [vmem:[#allocation2] sm:$0x3]
    %v90 = vld [vmem:[#allocation2 + $0x2] sm:$0x3]
    %v91 = vld [vmem:[#allocation2 + $0x4] sm:$0x3]
    %v92 = vld [vmem:[#allocation2 + $0x6] sm:$0x3]
    %v93 = vld [vmem:[#allocation2 + $0x8] sm:$0x3]
    %v94 = vld [vmem:[#allocation2 + $0xa] sm:$0x3]
    %v95 = vld [vmem:[#allocation2 + $0xc] sm:$0x3]
    %v96 = vld [vmem:[#allocation2 + $0xe] sm:$0x3]
    %v97 = vlaneseq
    %v98 = vshrl.u32 %v97, 7
    %v99 = vsub.s32 0, %v98
    %v100 = vrot.slane %v63, %v99
    %v101 = vlaneseq
    %v102 = vshrl.u32 %v101, 7
    %v103 = vsub.s32 0, %v102
    %v104 = vrot.slane %v77, %v103
    %v105 = vlaneseq
    %v106 = vshrl.u32 %v105, 7
    %v107 = vsub.s32 0, %v106
    %v108 = vrot.slane %v85, %v107
    %v109 = vlaneseq
    %v110 = vshrl.u32 %v109, 7
    %v111 = vsub.s32 0, %v110
    %v112 = vrot.slane %v87, %v111
    %v113 = vlaneseq
    %v114 = vshrl.u32 %v113, 7
    %v115 = vsub.s32 0, %v114
    %v116 = vrot.slane %v70, %v115
    %v117 = vlaneseq
    %v118 = vshrl.u32 %v117, 7
    %v119 = vsub.s32 0, %v118
    %v120 = vrot.slane %v84, %v119
    %v121 = vlaneseq
    %v122 = vshrl.u32 %v121, 7
    %v123 = vsub.s32 0, %v122
    %v124 = vrot.slane %v86, %v123
    %v125 = vlaneseq
    %v126 = vshrl.u32 %v125, 7
    %v127 = vsub.s32 0, %v126
    %v128 = vrot.slane %v88, %v127
    %v137 = vadd.f32 %v89, %v100
    %v138 = vadd.f32 %v90, %v104
    %v139 = vadd.f32 %v91, %v108
    %v140 = vadd.f32 %v92, %v112
    %v141 = vadd.f32 %v93, %v116
    %v142 = vadd.f32 %v94, %v120
    %v143 = vadd.f32 %v95, %v124
    %v144 = vadd.f32 %v96, %v128
    %vm145 = vcmask 254976
    %146 = vst.msk [vmem:[#allocation7] sm:$0x3] %vm145, %v137
    %147 = vst.msk [vmem:[#allocation7 + $0x2] sm:$0x3] %vm145, %v138
    %148 = vst.msk [vmem:[#allocation7 + $0x4] sm:$0x3] %vm145, %v139
    %149 = vst.msk [vmem:[#allocation7 + $0x6] sm:$0x3] %vm145, %v140
    %150 = vst.msk [vmem:[#allocation7 + $0x8] sm:$0x3] %vm145, %v141
    %151 = vst.msk [vmem:[#allocation7 + $0xa] sm:$0x3] %vm145, %v142
    %152 = vst.msk [vmem:[#allocation7 + $0xc] sm:$0x3] %vm145, %v143
    %153 = vst.msk [vmem:[#allocation7 + $0xe] sm:$0x3] %vm145, %v144
    // Predicated region
    $region18: #{tpu_custom_call.1} parent=1 // pred_check
      _
    $region19: #{tpu_custom_call.1} parent=1 // pred_check_branch
      %155 = sbr.rel (0) target = $region21
    $region20: #{tpu_custom_call.1} parent=1 // pred_region
      %s157 = ssub.s32 256, 256
      %158 = vsyncadd [#allocation4], %s157
      %s159 = sshll.u32 [#allocation7], 4
      %s160 = int_to_ptr.vmem [resolvable:$true] %s159
      %165 = dma.vmem_to_hbm [thread:$0]  %s160, 256, %s2, [#allocation4], 32, 32, 2
    $region21: #{tpu_custom_call.1} parent=1 // pred_fallthru
      _
    // Predicated region
    $region22: #{tpu_custom_call.1} parent=1 // pred_check
      _
    $region23: #{tpu_custom_call.1} parent=1 // pred_check_branch
      %167 = sbr.rel (0) target = $region25
    $region24: #{tpu_custom_call.1} parent=1 // pred_region
      %168 = dma.done [#allocation4], 256
    $region25: #{tpu_custom_call.1} parent=1 // pred_fallthru
      _
    %169 = vsyncpa [#allocation3], 1
    %170 = vsyncpa [#allocation6], 1
    %171 = vsyncpa [#allocation4], 1

</llo_original>
